<compile_context>
chip_gen: v6e
topology: v6e:2x2x1
jax: 0.10.0
libtpu: 0.0.40
codegen_flags: <defaults>
</compile_context>

<pallas_src>
import functools

import jax
import jax.numpy as jnp
from jax.experimental import pallas as pl
from jax.experimental.pallas import tpu as pltpu

GEM_EPS = 1e-6
_LANES = 128


def _static_pow(x, p):
    """x ** p for a trace-time-static p; integer p uses only VPU multiplies."""
    p = float(p)
    if p >= 1.0 and abs(p - round(p)) < 1e-12:
        n = int(round(p))
        result, base = None, x            # exponentiation by squaring (no EUP)
        while n:
            if n & 1:
                result = base if result is None else result * base
            n >>= 1
            if n:
                base = base * base
        return result
    return jnp.exp(p * jnp.log(x))        # non-integer static p: constant EUP path


def gem_head_kernel(*refs, n_hw, inv_hw, p_static, lane_acc):
    """Grid: (batch_blocks, spatial_tiles).

    Refs (the runtime-p path has a leading p_ref):
      p_ref      : [1, 1]           f32  SMEM  GeM exponent (only if p_static is None)
      feat_ref   : [TB, C, THW]     bf16/f32   feature tile (spatial on lanes)
      w_ref      : [C, NC_PAD]      f32  VMEM  linear weight^T, lane-padded
      b_ref      : [1, NC_PAD]      f32  VMEM  bias, lane-padded
      logits_ref : [TB, NC_PAD]     f32  out   per-sample logits (padded)
      acc_ref    : [TB, C, 128] or [TB, C] f32 VMEM scratch, running sum of x^p
    """
    if p_static is None:
        p_ref, feat_ref, w_ref, b_ref, logits_ref, acc_ref = refs
        p = p_ref[0, 0]                   # SMEM scalar, read at top level
        inv_p = 1.0 / p
    else:
        feat_ref, w_ref, b_ref, logits_ref, acc_ref = refs
        p = None
        inv_p = 1.0 / float(p_static)

    hw_idx = pl.program_id(1)             # program_id only at kernel top level

    @pl.when(hw_idx == 0)
    def _init():
        acc_ref[...] = jnp.zeros_like(acc_ref)

    # ---- GeM partial sum over this spatial tile: clamp(x, eps)^p ----
    x = feat_ref[...].astype(jnp.float32)         # upcast bf16 -> f32 on-chip
    x = jnp.maximum(x, GEM_EPS)                   # clamp(min=eps), keeps x > 0
    if p_static is None:
        xp = jnp.exp(p * jnp.log(x))              # runtime (learnable) p -> EUP
    else:
        xp = _static_pow(x, p_static)             # static p (default 3) -> VPU

    tb, c, thw = xp.shape
    if lane_acc:
        # Lane-wide accumulator: per-tile sums are plain VPU adds; the single
        # XLU cross-lane reduce is deferred to the finalize phase.
        acc_ref[...] += jnp.sum(xp.reshape(tb, c, thw // _LANES, _LANES), axis=2)
    else:
        acc_ref[...] += jnp.sum(xp, axis=-1)      # fallback when THW < 128

    # ---- finalize on the last spatial tile: mean, ^(1/p), linear head ----
    @pl.when(hw_idx == n_hw - 1)
    def _finalize():
        acc = acc_ref[...]
        if lane_acc:
            acc = jnp.sum(acc, axis=-1)                      # [TB, C]
        pooled = acc * inv_hw                                # avg-pool over HxW
        pooled = jnp.exp(jnp.log(pooled) * inv_p)            # (.)^(1/p), input > 0
        logits = jnp.dot(pooled, w_ref[...],
                         preferred_element_type=jnp.float32) + b_ref[...]
        logits_ref[...] = logits                             # unmasked 128-lane store


def _vmem_limit_bytes():
    """Scoped-VMEM limit: ~3/4 of physical per-core VMEM, capped at 100 MiB.
    (v5e/v6e: 128 MiB -> 96 MiB; v7x: 64 MiB/TC -> 48 MiB.)"""
    try:
        cap = int(pltpu.get_tpu_info().vmem_capacity_bytes)
    except Exception:
        cap = 64 * 1024 * 1024            # conservative default (v7x per-TC)
    return min((cap * 3) // 4, 100 * 1024 * 1024)


def _auto_tiles(batch, chans, hw, feat_itemsize, vmem_limit):
    """Pick (TB, THW).

    TB : largest divisor of batch up to 32, keeping >= 2 batch-parallel grid
         steps when batch >= 2 (v7x shards the parallel axis across 2 TCs).
    THW: largest multiple of 128 dividing HW such that the double-buffered
         feature tiles plus the accumulator stay under ~half the VMEM limit.
    """
    tb_cap = min(32, batch // 2) if batch >= 2 else 1
    tb = 1
    for d in range(max(tb_cap, 1), 0, -1):
        if batch % d == 0:
            tb = d
            break
    lane_divs = sorted((t for t in range(_LANES, hw + 1, _LANES) if hw % t == 0),
                       reverse=True)
    budget = vmem_limit // 2
    thw = None
    for t in lane_divs:
        if 2 * tb * chans * t * feat_itemsize + tb * chans * _LANES * 4 <= budget:
            thw = t
            break
    if thw is None:
        thw = lane_divs[-1] if lane_divs else hw
    return tb, thw


def tumor_classifier_forward(images_nchw, lin_weight, lin_bias, p=3.0,
                             class_weights=None, labels=None, *, tb=None, thw=None):
    """Forward pass of TumorClassifier with an Identity backbone.

    images_nchw : [B, C, H, W] f32/bf16 (== backbone feature map)
    lin_weight  : [NC, C] f32   nn.Linear weight (PyTorch convention)
    lin_bias    : [NC]    f32
    p           : GeM exponent. Python scalar -> static VPU fast path;
                  jax scalar / tracer -> runtime (learnable-p) EUP path.
    class_weights : [NC] f32 or None   CrossEntropyLoss class weights
    labels      : [B] int or None
    Returns (logits [B, NC], loss or None).
    """
    # TODO(synk): the timm CNN backbone (self.model) is not translated; Identity
    # stand-in — the kernel consumes the backbone feature map directly.
    B, C, H, W = images_nchw.shape
    NC = lin_weight.shape[0]
    HW = H * W
    NC_PAD = ((NC + _LANES - 1) // _LANES) * _LANES

    vmem_limit = _vmem_limit_bytes()
    auto_tb, auto_thw = _auto_tiles(B, C, HW, images_nchw.dtype.itemsize, vmem_limit)
    tb = auto_tb if tb is None else tb
    thw = auto_thw if thw is None else thw
    assert B % tb == 0, "batch block must divide B"
    assert HW % thw == 0, "spatial tile must divide H*W"
    n_hw = HW // thw
    lane_acc = (thw % _LANES == 0)

    # NCHW -> [B, C, HW] is a free view (contiguous dims merge): no transpose
    # pass over HBM and no dtype cast here (kernel upcasts on-chip).
    feat = images_nchw.reshape(B, C, HW)

    # Lane-dense classifier head: pad class dim to a multiple of 128 so the
    # logits store is an unmasked vst and the matmul uses full MXU columns.
    w_pad = jnp.zeros((C, NC_PAD), jnp.float32).at[:, :NC].set(
        lin_weight.astype(jnp.float32).T)
    b_pad = jnp.zeros((1, NC_PAD), jnp.float32).at[:, :NC].set(
        lin_bias.astype(jnp.float32)[None, :])

    p_is_static = isinstance(p, (int, float))
    kernel = functools.partial(
        gem_head_kernel, n_hw=n_hw, inv_hw=1.0 / float(HW),
        p_static=(float(p) if p_is_static else None), lane_acc=lane_acc)

    # Feature stream: (TB, C, THW) tiles, double-buffered by the Pallas pipeline.
    # (If profiling shows exposed DMA, add pipeline_mode=pl.Buffered(3) here.)
    feat_spec = pl.BlockSpec((tb, C, thw), lambda b, h: (b, 0, h))
    vmem_spec = pl.BlockSpec(memory_space=pltpu.MemorySpace.VMEM)
    in_specs = [feat_spec, vmem_spec, vmem_spec]
    inputs = [feat, w_pad, b_pad]
    if not p_is_static:
        in_specs = [pl.BlockSpec(memory_space=pltpu.MemorySpace.SMEM)] + in_specs
        inputs = [jnp.asarray(p, jnp.float32).reshape(1, 1)] + inputs

    acc_shape = (tb, C, _LANES) if lane_acc else (tb, C)

    grid_spec = pltpu.PrefetchScalarGridSpec(
        num_scalar_prefetch=0,
        grid=(B // tb, n_hw),
        in_specs=in_specs,
        out_specs=pl.BlockSpec((None, tb, NC_PAD), lambda b, h: (b, 0, 0)),
        scratch_shapes=[pltpu.VMEM(acc_shape, jnp.float32)],
    )

    logits_pad = pl.pallas_call(
        kernel,
        out_shape=jax.ShapeDtypeStruct((B // tb, tb, NC_PAD), jnp.float32),
        grid_spec=grid_spec,
        compiler_params=pltpu.CompilerParams(
            dimension_semantics=("parallel", "arbitrary"),
            vmem_limit_bytes=vmem_limit),
    )(*inputs)

    logits = logits_pad.reshape(B, NC_PAD)[:, :NC]

    loss = None
    if labels is not None:
        # Weighted CrossEntropy (mean reduction) on [B, NC]: trivially cheap in
        # the wrapper, and it keeps the kernel to a single lane-dense output.
        lab = labels.astype(jnp.int32)
        logp = jax.nn.log_softmax(logits, axis=-1)
        nll = -jnp.take_along_axis(logp, lab[:, None], axis=-1)[:, 0]
        if class_weights is None:
            loss = jnp.mean(nll)
        else:
            w = class_weights.astype(jnp.float32)[lab]
            loss = jnp.sum(w * nll) / jnp.sum(w)
    return logits, loss


def _ref_forward(feat_nchw, p, lin_weight, lin_bias, class_weights, labels):
    """Pure-JAX reference (GeM + linear + weighted CE)."""
    B, C = feat_nchw.shape[:2]
    x = feat_nchw.astype(jnp.float32).reshape(B, C, -1)
    x = jnp.maximum(x, GEM_EPS)
    pooled = jnp.mean(x ** p, axis=-1) ** (1.0 / p)
    logits = pooled @ lin_weight.astype(jnp.float32).T + lin_bias.astype(jnp.float32)
    logp = jax.nn.log_softmax(logits, axis=-1)
    nll = -jnp.take_along_axis(logp, labels[:, None], axis=-1)[:, 0]
    w = class_weights.astype(jnp.float32)[labels]
    return logits, jnp.sum(w * nll) / jnp.sum(w)


if __name__ == "__main__":
    # Small, deterministic setup consistent with the module:
    # B=2 samples, in_features=32 channels, 16x16 spatial, num_classes=4.
    B, C, H, W, NC = 2, 32, 16, 16, 4
    key = jax.random.PRNGKey(0)
    k_img, k_w, k_b, k_cw = jax.random.split(key, 4)

    images = jax.random.normal(k_img, (B, C, H, W), jnp.float32)
    images_bf16 = images.astype(jnp.bfloat16)      # bf16 on the wire: half the DMA bytes

    lin_weight = 0.05 * jax.random.normal(k_w, (NC, C), jnp.float32)   # nn.Linear(C, NC)
    lin_bias = 0.01 * jax.random.normal(k_b, (NC,), jnp.float32)
    class_weights = jax.random.uniform(k_cw, (NC,), jnp.float32,
                                       minval=0.5, maxval=1.5)          # cfg.class_weights_tensor
    labels = jnp.array([1, 3], jnp.int32)

    ref_logits, ref_loss = _ref_forward(images_bf16, 3.0, lin_weight, lin_bias,
                                        class_weights, labels)

    # (1) static-p VPU fast path (module default p=3); thw=128 with HW=256 gives
    #     grid (2, 2) so init / accumulate / finalize are all exercised.
    fwd_static = jax.jit(functools.partial(tumor_classifier_forward, p=3.0, thw=128))
    logits_s, loss_s = fwd_static(images_bf16, lin_weight, lin_bias,
                                  class_weights=class_weights, labels=labels)
    jax.block_until_ready((logits_s, loss_s))

    # (2) runtime (learnable) p path with automatic VMEM-aware tile selection.
    fwd_runtime = jax.jit(tumor_classifier_forward)
    logits_r, loss_r = fwd_runtime(images_bf16, lin_weight, lin_bias, jnp.float32(3.0),
                                   class_weights=class_weights, labels=labels)
    jax.block_until_ready((logits_r, loss_r))

    assert logits_s.shape == (B, NC) and loss_s.shape == ()
    assert jnp.allclose(logits_s, ref_logits, rtol=1e-3, atol=1e-3)
    assert jnp.allclose(loss_s, ref_loss, rtol=1e-3, atol=1e-3)
    assert jnp.allclose(logits_r, ref_logits, rtol=1e-3, atol=1e-3)
    assert jnp.allclose(loss_r, ref_loss, rtol=1e-3, atol=1e-3)
    print("KERNEL_OK")
</pallas_src>

<mosaic_0001>
module attributes {stable_mosaic.version = 11 : i64} {
  func.func @gem_head_kernel(%arg0: i32, %arg1: i32, %arg2: memref<1x32x128xbf16, #tpu.memory_space<vmem>>, %arg3: memref<32x128xf32, #tpu.memory_space<vmem>>, %arg4: memref<1x128xf32, #tpu.memory_space<vmem>>, %arg5: memref<1x1x128xf32, #tpu.memory_space<vmem>>, %arg6: memref<1x32x128xf32, #tpu.memory_space<vmem>>) attributes {dimension_semantics = [#tpu.dimension_semantics<parallel>, #tpu.dimension_semantics<arbitrary>], iteration_bounds = array<i64: 2, 2>, scalar_prefetch = 0 : i64, scratch_operands = 1 : i64, tpu.core_type = #tpu.core_type<tc>, window_params = [{transform_indices = @transform_0, window_bounds = array<i64: 1, 32, 128>}, {pipeline_mode = #tpu.pipeline_mode<synchronous>, transform_indices = @transform_1, window_bounds = array<i64: 32, 128>}, {pipeline_mode = #tpu.pipeline_mode<synchronous>, transform_indices = @transform_2, window_bounds = array<i64: 1, 128>}, {transform_indices = @transform_3, window_bounds = array<i64: 1, 1, 128>}]} {
    %c0_i32 = arith.constant 0 : i32
    %0 = arith.cmpi eq, %arg1, %c0_i32 : i32
    %1 = arith.extui %0 : i1 to i32
    %c0_i32_0 = arith.constant 0 : i32
    %2 = arith.cmpi ne, %1, %c0_i32_0 : i32
    scf.if %2 {
      %cst_11 = arith.constant 0.000000e+00 : f32
      %17 = vector.broadcast %cst_11 : f32 to vector<1x32x128xf32>
      %c0_12 = arith.constant 0 : index
      %c0_13 = arith.constant 0 : index
      %c0_14 = arith.constant 0 : index
      %18 = vector.load %arg6[%c0_12, %c0_13, %c0_14] : memref<1x32x128xf32, #tpu.memory_space<vmem>>, vector<1x32x128xf32>
      tpu.vector_store %arg6[%c0_12, %c0_13, %c0_14], %17 {strides = array<i32>} : memref<1x32x128xf32, #tpu.memory_space<vmem>>, vector<1x32x128xf32>,
    } else {
    }
    %c0 = arith.constant 0 : index
    %c0_1 = arith.constant 0 : index
    %c0_2 = arith.constant 0 : index
    %3 = vector.load %arg2[%c0, %c0_1, %c0_2] : memref<1x32x128xbf16, #tpu.memory_space<vmem>>, vector<1x32x128xbf16>
    %4 = arith.extf %3 : vector<1x32x128xbf16> to vector<1x32x128xf32>
    %cst = arith.constant 9.99999997E-7 : f32
    %5 = vector.broadcast %cst : f32 to vector<1x32x128xf32>
    %6 = arith.maximumf %4, %5 : vector<1x32x128xf32>
    %7 = arith.mulf %6, %6 : vector<1x32x128xf32>
    %8 = arith.mulf %6, %7 : vector<1x32x128xf32>
    %c0_3 = arith.constant 0 : index
    %c0_4 = arith.constant 0 : index
    %c0_5 = arith.constant 0 : index
    %9 = vector.load %arg6[%c0_3, %c0_4, %c0_5] : memref<1x32x128xf32, #tpu.memory_space<vmem>>, vector<1x32x128xf32>
    %10 = vector.shape_cast %8 : vector<1x32x128xf32> to vector<1x32x1x128xf32>
    %cst_6 = arith.constant dense<0.000000e+00> : vector<1x32x128xf32>
    %11 = vector.multi_reduction <add>, %10, %cst_6 [2] : vector<1x32x1x128xf32> to vector<1x32x128xf32>
    %12 = arith.addf %9, %11 : vector<1x32x128xf32>
    %c0_7 = arith.constant 0 : index
    %c0_8 = arith.constant 0 : index
    %c0_9 = arith.constant 0 : index
    %13 = vector.load %arg6[%c0_7, %c0_8, %c0_9] : memref<1x32x128xf32, #tpu.memory_space<vmem>>, vector<1x32x128xf32>
    tpu.vector_store %arg6[%c0_7, %c0_8, %c0_9], %12 {strides = array<i32>} : memref<1x32x128xf32, #tpu.memory_space<vmem>>, vector<1x32x128xf32>,
    %c1_i32 = arith.constant 1 : i32
    %14 = arith.cmpi eq, %arg1, %c1_i32 : i32
    %15 = arith.extui %14 : i1 to i32
    %c0_i32_10 = arith.constant 0 : i32
    %16 = arith.cmpi ne, %15, %c0_i32_10 : i32
    scf.if %16 {
      %c0_11 = arith.constant 0 : index
      %c0_12 = arith.constant 0 : index
      %c0_13 = arith.constant 0 : index
      %17 = vector.load %arg6[%c0_11, %c0_12, %c0_13] : memref<1x32x128xf32, #tpu.memory_space<vmem>>, vector<1x32x128xf32>
      %cst_14 = arith.constant dense<0.000000e+00> : vector<1x32xf32>
      %18 = vector.multi_reduction <add>, %17, %cst_14 [2] : vector<1x32x128xf32> to vector<1x32xf32>
      %cst_15 = arith.constant 3.906250e-03 : f32
      %19 = vector.broadcast %cst_15 : f32 to vector<1x32xf32>
      %20 = arith.mulf %18, %19 : vector<1x32xf32>
      %21 = math.log %20 : vector<1x32xf32>
      %cst_16 = arith.constant 0.333333343 : f32
      %22 = vector.broadcast %cst_16 : f32 to vector<1x32xf32>
      %23 = arith.mulf %21, %22 : vector<1x32xf32>
      %24 = math.exp %23 : vector<1x32xf32>
      %c0_17 = arith.constant 0 : index
      %c0_18 = arith.constant 0 : index
      %25 = vector.load %arg3[%c0_17, %c0_18] : memref<32x128xf32, #tpu.memory_space<vmem>>, vector<32x128xf32>
      %cst_19 = arith.constant dense<0.000000e+00> : vector<1x128xf32>
      %26 = tpu.matmul %24, %25, %cst_19 {dimension_numbers = #tpu.dot_dimension_numbers<[1], [0], [0], [1], [0, 0, 1, 1], [], []>} : vector<1x32xf32>, vector<32x128xf32>, vector<1x128xf32> -> vector<1x128xf32>
      %c0_20 = arith.constant 0 : index
      %c0_21 = arith.constant 0 : index
      %27 = vector.load %arg4[%c0_20, %c0_21] : memref<1x128xf32, #tpu.memory_space<vmem>>, vector<1x128xf32>
      %28 = arith.addf %26, %27 : vector<1x128xf32>
      %c0_22 = arith.constant 0 : index
      %c0_23 = arith.constant 0 : index
      %c0_24 = arith.constant 0 : index
      %29 = vector.load %arg5[%c0_22, %c0_23, %c0_24] : memref<1x1x128xf32, #tpu.memory_space<vmem>>, vector<1x1x128xf32>
      %30 = vector.shape_cast %29 : vector<1x1x128xf32> to vector<1x128xf32>
      %31 = vector.shape_cast %28 : vector<1x128xf32> to vector<1x1x128xf32>
      tpu.vector_store %arg5[%c0_22, %c0_23, %c0_24], %31 {strides = array<i32>} : memref<1x1x128xf32, #tpu.memory_space<vmem>>, vector<1x1x128xf32>,
    } else {
    }
    return
  }
  func.func @transform_0(%arg0: i32, %arg1: i32) -> (i32, i32, i32) {
    %c0_i32 = arith.constant 0 : i32
    %c0_i32_0 = arith.constant 0 : i32
    return %arg0, %c0_i32, %arg1 : i32, i32, i32
  }
  func.func @transform_1(%arg0: i32, %arg1: i32) -> (i32, i32) {
    %c0_i32 = arith.constant 0 : i32
    %c0_i32_0 = arith.constant 0 : i32
    %c0_i32_1 = arith.constant 0 : i32
    return %c0_i32, %c0_i32_0 : i32, i32
  }
  func.func @transform_2(%arg0: i32, %arg1: i32) -> (i32, i32) {
    %c0_i32 = arith.constant 0 : i32
    %c0_i32_0 = arith.constant 0 : i32
    %c0_i32_1 = arith.constant 0 : i32
    return %c0_i32, %c0_i32_0 : i32, i32
  }
  func.func @transform_3(%arg0: i32, %arg1: i32) -> (i32, i32, i32) {
    %c0_i32 = arith.constant 0 : i32
    %c0_i32_0 = arith.constant 0 : i32
    %c0_i32_1 = arith.constant 0 : i32
    return %arg0, %c0_i32, %c0_i32_0 : i32, i32, i32
  }
}

</mosaic_0001>

<llo_original>
// kernel: tumor_classifier_forward.1
$region0: #{tumor_classifier_forward.1}
  #allocation0 [shape = 'u32[]', space=smem, size = 0x4, offset = 0x4, fixed_abs, tag = 'smem constant byte address 0x4 - core index']
  #allocation1 [shape = 'u32[144,128]{1,0:T(1,128)}', space=vmem, size = 0x12000, scoped, tag = 'internal scratch']
  #allocation2 [shape = 'f32[1,32,128]{2,1,0:T(8,128)}', space=vmem, size = 0x4000, scoped, tag = 'scratch operand']
  %s0 = inlined_call_operand.vmem [shape: bf16[2,32,256], index: 0, kind: input, shape index: {}]
  %s1 = inlined_call_operand.vmem [shape: f32[32,128], index: 1, kind: input, shape index: {}]
  %s2 = inlined_call_operand.vmem [shape: f32[1,128], index: 2, kind: input, shape index: {}]
  %s3 = inlined_call_operand.vmem [shape: f32[2,1,128], index: 3, kind: output, shape index: {}]
  %s4 = sld [smem:[#allocation0]]
  $region94: #{tumor_classifier_forward.1} parent=0
    _
  %s6 = ssub.s32 1, %s4
  %s7 = scalar_select 0, %s6, %s4
  $region1: #{tumor_classifier_forward.1} parent=0
    #allocation3 [shape = 'u8[16384]{0}', space=vmem, size = 0x4000, scoped, tag = 'input window, operand 0']
    loop: start=0, step=1, limit=6
    $region2: #{tumor_classifier_forward.1} parent=1 // loop_pre_header
      _
    $region3: #{tumor_classifier_forward.1} parent=1 // loop_header
      %s9 = sphi 0, %s13
      %p10 = scmp.ge.s32.totalorder %s9, 6
      %s16 = sphi 0, %s28
      %s17 = sphi 0, %s24
      %s18 = sphi 0, %s16
      %s19 = sphi 0, %s17
      %s20 = sphi 0, %s18
      %s21 = sphi 0, %s19
      %s33 = sphi 0, %s35
      %s36 = sphi 0, %s33
      %s37 = sphi 0, %s36
      %s53 = sphi 0, %s37
      %s57 = sphi 0, %s57
      %s59 = sphi 0, %s57
      %s60 = sphi 0, %s59
      %s74 = sphi 0, %s60
      %s78 = sphi 0, %s78
      %s80 = sphi 0, %s78
      %s81 = sphi 0, %s80
      %s95 = sphi 0, %s81
      %s101 = sphi 0, %s103
      %s104 = sphi 0, %s101
      %s105 = sphi 0, %s104
      %s121 = sphi 0, %s105
    $region4: #{tumor_classifier_forward.1} parent=1 // loop_header_branch
      %12 = sbr.rel (%p10) target = $region8
    $region5: #{tumor_classifier_forward.1} parent=1 // loop_body
      %s14 = ssub.s32 %s9, 1
      %s15 = ssub.s32 %s9, 2
      %s22 = sadd.s32 1, %s17
      %p23 = scmp.ge.s32.totalorder %s22, 2
      %s24 = scalar_select %p23, 0, %s22
      %s25 = sadd.s32 1, %s16
      %s26 = scalar_select %p23, %s25, %s16
      %p27 = scmp.ge.s32.totalorder %s26, 2
      %s28 = scalar_select %p27, 0, %s26
      %s29 = ssub.s32 %s16, %s28
      %s30 = ssub.s32 %s17, %s24
      %s31 = sor.u32 %s29, %s30
      %p32 = scmp.eq.s32.totalorder %s31, 0
      %s34 = sadd.s32 %s33, 1
      %s35 = scalar_select %p32, %s33, %s34
      %p38 = pneg %p32
      %p39 = scmp.eq.s32.totalorder %s9, 3
      %p40 = por %p38, %p39
      %p41 = scmp.ne.s32.totalorder %s33, %s36
      %p42 = scmp.eq.s32.totalorder %s9, 0
      %p43 = por %p41, %p42
      %p44 = scmp.ne.s32.totalorder %s33, %s36
      %p45 = scmp.eq.s32.totalorder %s14, 3
      %p46 = por %p44, %p45
      %p47 = scmp.ne.s32.totalorder %s36, %s37
      %p48 = scmp.eq.s32.totalorder %s14, 0
      %p49 = por %p47, %p48
      %p50 = scmp.ne.s32.totalorder %s36, %s37
      %p51 = scmp.eq.s32.totalorder %s15, 3
      %p52 = por %p50, %p51
      %p54 = scmp.ne.s32.totalorder %s37, %s53
      %p55 = scmp.eq.s32.totalorder %s15, 0
      %p56 = por %p54, %p55
      %s58 = sadd.s32 %s57, 1
      %p61 = scmp.eq.s32.totalorder %s9, 3
      %p62 = scmp.ne.s32.totalorder %s57, %s59
      %p63 = scmp.eq.s32.totalorder %s9, 0
      %p64 = por %p62, %p63
      %p65 = scmp.ne.s32.totalorder %s57, %s59
      %p66 = scmp.eq.s32.totalorder %s14, 3
      %p67 = por %p65, %p66
      %p68 = scmp.ne.s32.totalorder %s59, %s60
      %p69 = scmp.eq.s32.totalorder %s14, 0
      %p70 = por %p68, %p69
      %p71 = scmp.ne.s32.totalorder %s59, %s60
      %p72 = scmp.eq.s32.totalorder %s15, 3
      %p73 = por %p71, %p72
      %p75 = scmp.ne.s32.totalorder %s60, %s74
      %p76 = scmp.eq.s32.totalorder %s15, 0
      %p77 = por %p75, %p76
      %s79 = sadd.s32 %s78, 1
      %p82 = scmp.eq.s32.totalorder %s9, 3
      %p83 = scmp.ne.s32.totalorder %s78, %s80
      %p84 = scmp.eq.s32.totalorder %s9, 0
      %p85 = por %p83, %p84
      %p86 = scmp.ne.s32.totalorder %s78, %s80
      %p87 = scmp.eq.s32.totalorder %s14, 3
      %p88 = por %p86, %p87
      %p89 = scmp.ne.s32.totalorder %s80, %s81
      %p90 = scmp.eq.s32.totalorder %s14, 0
      %p91 = por %p89, %p90
      %p92 = scmp.ne.s32.totalorder %s80, %s81
      %p93 = scmp.eq.s32.totalorder %s15, 3
      %p94 = por %p92, %p93
      %p96 = scmp.ne.s32.totalorder %s81, %s95
      %p97 = scmp.eq.s32.totalorder %s15, 0
      %p98 = por %p96, %p97
      %s99 = ssub.s32 %s16, %s28
      %p100 = scmp.eq.s32.totalorder %s99, 0
      %s102 = sadd.s32 %s101, 1
      %s103 = scalar_select %p100, %s101, %s102
      %p106 = pneg %p100
      %p107 = scmp.eq.s32.totalorder %s9, 3
      %p108 = por %p106, %p107
      %p109 = scmp.ne.s32.totalorder %s101, %s104
      %p110 = scmp.eq.s32.totalorder %s9, 0
      %p111 = por %p109, %p110
      %p112 = scmp.ne.s32.totalorder %s101, %s104
      %p113 = scmp.eq.s32.totalorder %s14, 3
      %p114 = por %p112, %p113
      %p115 = scmp.ne.s32.totalorder %s104, %s105
      %p116 = scmp.eq.s32.totalorder %s14, 0
      %p117 = por %p115, %p116
      %p118 = scmp.ne.s32.totalorder %s104, %s105
      %p119 = scmp.eq.s32.totalorder %s15, 3
      %p120 = por %p118, %p119
      %p122 = scmp.ne.s32.totalorder %s105, %s121
      %p123 = scmp.eq.s32.totalorder %s15, 0
      %p124 = por %p122, %p123
      %p125 = scmp.le.s32.totalorder 1, %s9
      %p126 = scmp.lt.s32.totalorder %s9, 5
      %p127 = pnand %p125, %p126
      %p128 = pneg %p127
      // Predicated region
      $region9: #{tumor_classifier_forward.1} parent=5 // pred_check
        _
      $region10: #{tumor_classifier_forward.1} parent=5 // pred_check_branch
        %130 = sbr.rel (%p127) target = $region12
      $region11: #{tumor_classifier_forward.1} parent=5 // pred_region
        %s131 = ssub.s32 %s9, 1
        // Predicated region
        $region13: #{tumor_classifier_forward.1} parent=11 // pred_check
          %p132 = pneg %p70
        $region14: #{tumor_classifier_forward.1} parent=11 // pred_check_branch
          %134 = sbr.rel (%p132) target = $region16
        $region15: #{tumor_classifier_forward.1} parent=11 // pred_region
          _
        $region16: #{tumor_classifier_forward.1} parent=11 // pred_fallthru
          _
        // Predicated region
        $region17: #{tumor_classifier_forward.1} parent=11 // pred_check
          %p135 = pneg %p91
        $region18: #{tumor_classifier_forward.1} parent=11 // pred_check_branch
          %137 = sbr.rel (%p135) target = $region20
        $region19: #{tumor_classifier_forward.1} parent=11 // pred_region
          _
        $region20: #{tumor_classifier_forward.1} parent=11 // pred_fallthru
          _
      $region12: #{tumor_classifier_forward.1} parent=5 // pred_fallthru
        _
      %p138 = scmp.lt.s32.totalorder %s9, 4
      // Predicated region
      $region21: #{tumor_classifier_forward.1} parent=5 // pred_check
        %p139 = pneg %p138
      $region22: #{tumor_classifier_forward.1} parent=5 // pred_check_branch
        %141 = sbr.rel (%p139) target = $region24
      $region23: #{tumor_classifier_forward.1} parent=5 // pred_region
        // Predicated region
        $region25: #{tumor_classifier_forward.1} parent=23 // pred_check
          %p142 = pneg %p43
        $region26: #{tumor_classifier_forward.1} parent=23 // pred_check_branch
          %144 = sbr.rel (%p142) target = $region28
        $region27: #{tumor_classifier_forward.1} parent=23 // pred_region
          %s145 = sand.u32 %s33, 1
          %s146 = sand.u32 %s33, 1
          %s147 = smul.addr %s146, 16
          %s148 = scalar_lea.vmem [#allocation3], %s147
          %s149 = smul.addr %s16, 8
          %s150 = sadd.s32 %s17, %s149
          %s151 = smul.addr %s150, 4
          %s152 = scalar_lea.vmem %s0, %s151
          // Predicated region
          $region29: #{tumor_classifier_forward.1} parent=27 // pred_check
            _
          $region30: #{tumor_classifier_forward.1} parent=27 // pred_check_branch
            %154 = sbr.rel (0) target = $region32
          $region31: #{tumor_classifier_forward.1} parent=27 // pred_region
            // Predicated region
            $region33: #{tumor_classifier_forward.1} parent=31 // pred_check
              _
            $region34: #{tumor_classifier_forward.1} parent=31 // pred_check_branch
              %156 = sbr.rel target = $region36
            $region35: #{tumor_classifier_forward.1} parent=31 // pred_region
              // Predicated region
              $region48: #{tumor_classifier_forward.1} parent=35 // pred_check
                _
              $region49: #{tumor_classifier_forward.1} parent=35 // pred_check_branch
                %178 = sbr.rel (0) target = $region51
              $region50: #{tumor_classifier_forward.1} parent=35 // pred_region
                loop: start=0, step=1, limit=1
                $region52: #{tumor_classifier_forward.1} parent=50 // loop_pre_header
                  _
                $region53: #{tumor_classifier_forward.1} parent=50 // loop_header
                  %s180 = sphi 0, %s184
                  %p181 = scmp.ge.s32.totalorder %s180, 1
                  %s185 = sphi %s152, %s152
                  %s186 = sphi %s148, %s148
                $region54: #{tumor_classifier_forward.1} parent=50 // loop_header_branch
                  %183 = sbr.rel (%p181) target = $region58
                $region55: #{tumor_classifier_forward.1} parent=50 // loop_body
                  _
                $region56: #{tumor_classifier_forward.1} parent=50 // loop_footer
                  %s184 = sadd.s32 1, %s180
                $region57: #{tumor_classifier_forward.1} parent=50 // loop_footer_branch
                  %179 = sbr.rel target = $region53
                $region58: #{tumor_classifier_forward.1} parent=50 // loop_exit
                  _
                %s188 = ssub.s32 16, 1
                loop: start=0, step=1, limit=1
                $region59: #{tumor_classifier_forward.1} parent=50 // loop_pre_header
                  _
                $region60: #{tumor_classifier_forward.1} parent=50 // loop_header
                  %s190 = sphi 0, %s194
                  %p191 = scmp.ge.s32.totalorder %s190, 1
                  %s195 = sphi %s152, %s152
                  %s196 = sphi %s148, %s148
                $region61: #{tumor_classifier_forward.1} parent=50 // loop_header_branch
                  %193 = sbr.rel (%p191) target = $region65
                $region62: #{tumor_classifier_forward.1} parent=50 // loop_body
                  %v197 = vld [vmem:[%s195] sm:%s188]
                  %198 = vst [vmem:[%s196] sm:%s188] %v197
                  %v199 = vld [vmem:[%s195 + $0x8] sm:%s188]
                  %200 = vst [vmem:[%s196 + $0x4] sm:%s188] %v199
                  %v201 = vld [vmem:[%s195 + $0x10] sm:%s188]
                  %202 = vst [vmem:[%s196 + $0x8] sm:%s188] %v201
                  %v203 = vld [vmem:[%s195 + $0x18] sm:%s188]
                  %204 = vst [vmem:[%s196 + $0xc] sm:%s188] %v203
                $region63: #{tumor_classifier_forward.1} parent=50 // loop_footer
                  %s194 = sadd.s32 1, %s190
                $region64: #{tumor_classifier_forward.1} parent=50 // loop_footer_branch
                  %189 = sbr.rel target = $region60
                $region65: #{tumor_classifier_forward.1} parent=50 // loop_exit
                  _
              $region51: #{tumor_classifier_forward.1} parent=35 // pred_fallthru
                _
            $region36: #{tumor_classifier_forward.1} parent=31 // pred_fallthru
              _
            // Predicated region
            $region37: #{tumor_classifier_forward.1} parent=31 // pred_check
              _
            $region38: #{tumor_classifier_forward.1} parent=31 // pred_check_branch
              %158 = sbr.rel (0) target = $region40
            $region39: #{tumor_classifier_forward.1} parent=31 // pred_region
              %s160 = ssub.s32 16, 1
              loop: start=0, step=1, limit=1
              $region41: #{tumor_classifier_forward.1} parent=39 // loop_pre_header
                _
              $region42: #{tumor_classifier_forward.1} parent=39 // loop_header
                %s162 = sphi 0, %s166
                %p163 = scmp.ge.s32.totalorder %s162, 1
                %s167 = sphi %s152, %s152
                %s168 = sphi %s148, %s148
              $region43: #{tumor_classifier_forward.1} parent=39 // loop_header_branch
                %165 = sbr.rel (%p163) target = $region47
              $region44: #{tumor_classifier_forward.1} parent=39 // loop_body
                %v169 = vld [vmem:[%s167] sm:%s160]
                %170 = vst [vmem:[%s168] sm:%s160] %v169
                %v171 = vld [vmem:[%s167 + $0x8] sm:%s160]
                %172 = vst [vmem:[%s168 + $0x4] sm:%s160] %v171
                %v173 = vld [vmem:[%s167 + $0x10] sm:%s160]
                %174 = vst [vmem:[%s168 + $0x8] sm:%s160] %v173
                %v175 = vld [vmem:[%s167 + $0x18] sm:%s160]
                %176 = vst [vmem:[%s168 + $0xc] sm:%s160] %v175
              $region45: #{tumor_classifier_forward.1} parent=39 // loop_footer
                %s166 = sadd.s32 1, %s162
              $region46: #{tumor_classifier_forward.1} parent=39 // loop_footer_branch
                %161 = sbr.rel target = $region42
              $region47: #{tumor_classifier_forward.1} parent=39 // loop_exit
                _
            $region40: #{tumor_classifier_forward.1} parent=31 // pred_fallthru
              _
          $region32: #{tumor_classifier_forward.1} parent=27 // pred_fallthru
            _
          %205 = vnop
        $region28: #{tumor_classifier_forward.1} parent=23 // pred_fallthru
          _
      $region24: #{tumor_classifier_forward.1} parent=5 // pred_fallthru
        _
      %p206 = scmp.le.s32.totalorder 1, %s9
      %p207 = scmp.lt.s32.totalorder %s9, 5
      %p208 = pnand %p206, %p207
      %p209 = pneg %p208
      // Predicated region
      $region66: #{tumor_classifier_forward.1} parent=5 // pred_check
        _
      $region67: #{tumor_classifier_forward.1} parent=5 // pred_check_branch
        %211 = sbr.rel (%p208) target = $region69
      $region68: #{tumor_classifier_forward.1} parent=5 // pred_region
        %s212 = ssub.s32 %s9, 1
        %s213 = sand.u32 %s36, 1
        %s214 = sand.u32 %s36, 1
        %s215 = smul.addr %s214, 16
        %s216 = scalar_lea.vmem [#allocation3], %s215
        // Predicated region
        $region70: #{tumor_classifier_forward.1} parent=68 // pred_check
          %p217 = pneg %p49
        $region71: #{tumor_classifier_forward.1} parent=68 // pred_check_branch
          %219 = sbr.rel (%p217) target = $region73
        $region72: #{tumor_classifier_forward.1} parent=68 // pred_region
          _
        $region73: #{tumor_classifier_forward.1} parent=68 // pred_fallthru
          _
        %s220 = sand.u32 %s36, 1
        %s221 = sand.u32 %s36, 1
        %s222 = smul.addr %s221, 16
        %s223 = scalar_lea.vmem [#allocation3], %s222
        %p224 = pneg %p49
        %p225 = pneg %p46
        %p226 = pneg %p70
        %p227 = pneg %p67
        %p228 = pneg %p91
        %p229 = pneg %p88
        %p230 = pneg %p117
        %p231 = pneg %p114
        %p232 = scmp.lt.s32.totalorder %s18, 1
        %s233 = scalar_select %p232, %s18, 1
        %s234 = scalar_lea.vmem %s3, %s233
        %p235 = scmp.lt.s32.totalorder %s18, 1
        %s236 = scalar_select %p235, %s18, 1
        %s237 = scalar_lea.vmem %s3, %s236
        %p238 = scmp.eq.s32.totalorder %s19, 0
        // Predicated region
        $region74: #{tumor_classifier_forward.1} parent=68 // pred_check
          %p239 = pneg %p238
        $region75: #{tumor_classifier_forward.1} parent=68 // pred_check_branch
          %241 = sbr.rel (%p239) target = $region77
        $region76: #{tumor_classifier_forward.1} parent=68 // pred_region
          %242 = vst [vmem:[#allocation2] sm:$0xff] 0.0
          %243 = vst [vmem:[#allocation2 + $0x8] sm:$0xff] 0.0
          %244 = vst [vmem:[#allocation2 + $0x10] sm:$0xff] 0.0
          %245 = vst [vmem:[#allocation2 + $0x18] sm:$0xff] 0.0
        $region77: #{tumor_classifier_forward.1} parent=68 // pred_fallthru
          _
        %v246 = vld [vmem:[%s216] sm:$0xf]
        %v247 = vld [vmem:[%s216 + $0x4] sm:$0xf]
        %v248 = vld [vmem:[%s216 + $0x8] sm:$0xf]
        %v249 = vld [vmem:[%s216 + $0xc] sm:$0xf]
        %v250 = vunpack.c.l.bf16 %v246
        %v251 = vunpack.c.l.bf16 %v247
        %v252 = vunpack.c.l.bf16 %v248
        %v253 = vunpack.c.l.bf16 %v249
        %v254 = vmax.f32 %v250, 1e-06
        %v255 = vmax.f32 %v251, 1e-06
        %v256 = vmax.f32 %v252, 1e-06
        %v257 = vmax.f32 %v253, 1e-06
        %v258 = vmul.f32 %v254, %v254
        %v259 = vmul.f32 %v255, %v255
        %v260 = vmul.f32 %v256, %v256
        %v261 = vmul.f32 %v257, %v257
        %v262 = vmul.f32 %v254, %v258
        %v263 = vmul.f32 %v255, %v259
        %v264 = vmul.f32 %v256, %v260
        %v265 = vmul.f32 %v257, %v261
        %v266 = vld [vmem:[#allocation2] sm:$0xff]
        %v267 = vld [vmem:[#allocation2 + $0x8] sm:$0xff]
        %v268 = vld [vmem:[#allocation2 + $0x10] sm:$0xff]
        %v269 = vld [vmem:[#allocation2 + $0x18] sm:$0xff]
        %v270 = vadd.f32 %v262, 0.0
        %v271 = vadd.f32 %v263, 0.0
        %v272 = vadd.f32 %v264, 0.0
        %v273 = vadd.f32 %v265, 0.0
        %v274 = vadd.f32 %v266, %v270
        %v275 = vadd.f32 %v267, %v271
        %v276 = vadd.f32 %v268, %v272
        %v277 = vadd.f32 %v269, %v273
        %278 = vst [vmem:[#allocation2] sm:$0xff] %v274
        %279 = vst [vmem:[#allocation2 + $0x8] sm:$0xff] %v275
        %280 = vst [vmem:[#allocation2 + $0x10] sm:$0xff] %v276
        %281 = vst [vmem:[#allocation2 + $0x18] sm:$0xff] %v277
        %p282 = scmp.eq.s32.totalorder %s19, 1
        // Predicated region
        $region78: #{tumor_classifier_forward.1} parent=68 // pred_check
          %p283 = pneg %p282
        $region79: #{tumor_classifier_forward.1} parent=68 // pred_check_branch
          %285 = sbr.rel (%p283) target = $region81
        $region80: #{tumor_classifier_forward.1} parent=68 // pred_region
          %v286 = vld [vmem:[#allocation2] sm:$0xff]
          %v287 = vld [vmem:[#allocation2 + $0x8] sm:$0xff]
          %v288 = vld [vmem:[#allocation2 + $0x10] sm:$0xff]
          %v289 = vld [vmem:[#allocation2 + $0x18] sm:$0xff]
          %290 = vadd.xlane.f32.xlu0 %v286
          %v291 = vpop.xlane.xlu0 %290
          %292 = vadd.xlane.f32.xlu0 %v287
          %v293 = vpop.xlane.xlu0 %292
          %294 = vadd.xlane.f32.xlu0 %v288
          %v295 = vpop.xlane.xlu0 %294
          %296 = vadd.xlane.f32.xlu0 %v289
          %v297 = vpop.xlane.xlu0 %296
          %v298 = vmul.f32 %v291, 0.00390625
          %v299 = vmul.f32 %v293, 0.00390625
          %v300 = vmul.f32 %v295, 0.00390625
          %v301 = vmul.f32 %v297, 0.00390625
          %v302 = vlog2.pop %v298
          %v303 = vmul.f32 %v302, 0.6931472
          %v304 = vlog2.pop %v299
          %v305 = vmul.f32 %v304, 0.6931472
          %v306 = vlog2.pop %v300
          %v307 = vmul.f32 %v306, 0.6931472
          %v308 = vlog2.pop %v301
          %v309 = vmul.f32 %v308, 0.6931472
          %v310 = vmul.f32 %v303, 0.33333334
          %v311 = vmul.f32 %v305, 0.33333334
          %v312 = vmul.f32 %v307, 0.33333334
          %v313 = vmul.f32 %v309, 0.33333334
          %v314 = vmul.f32 %v310, 1.442695
          %v315 = vpow.pop %v314
          %v316 = vmul.f32 %v311, 1.442695
          %v317 = vpow.pop %v316
          %v318 = vmul.f32 %v312, 1.442695
          %v319 = vpow.pop %v318
          %v320 = vmul.f32 %v313, 1.442695
          %v321 = vpow.pop %v320
          %v322 = vld [vmem:[%s1] sm:$0xff]
          %v323 = vld [vmem:[%s1 + $0x8] sm:$0xff]
          %v324 = vld [vmem:[%s1 + $0x10] sm:$0xff]
          %v325 = vld [vmem:[%s1 + $0x18] sm:$0xff]
          %v326 = vld [vmem:[%s2] sm:$0x1]
          %v331 = vlaneseq
          %v332 = vand.u32 %v331, 127
          %v333 = vlaneseq
          %v334 = vshrl.u32 %v333, 7
          %v335 = vsub.s32 %v332, %v334
          %v336 = vrot.slane %v315, %v335
          %v337 = vadd.s32 %v332, 4294967288
          %v338 = vlaneseq
          %v339 = vshrl.u32 %v338, 7
          %v340 = vsub.s32 %v337, %v339
          %v341 = vrot.slane %v317, %v340
          %vm342 = vcmask 130112
          %v343 = vsel %vm342, %v341, %v336
          %v344 = vadd.s32 %v332, 4294967280
          %v345 = vlaneseq
          %v346 = vshrl.u32 %v345, 7
          %v347 = vsub.s32 %v344, %v346
          %v348 = vrot.slane %v319, %v347
          %vm349 = vcmask 195712
          %v350 = vsel %vm349, %v348, %v343
          %v351 = vadd.s32 %v332, 4294967272
          %v352 = vlaneseq
          %v353 = vshrl.u32 %v352, 7
          %v354 = vsub.s32 %v351, %v353
          %v355 = vrot.slane %v321, %v354
          %vm356 = vcmask 261312
          %v357 = vsel %vm356, %v355, %v350
          %vm358 = vcmask 261120
          %v359 = vsel %vm358, %v357, 0
          %361 = vmatprep.subr.mxu0 0.0
          %362 = vmatpush1.msra.mxu0 0.0
          %363 = vmatprep.subr.mxu0 0.0
          %364 = vmatpush1.msra.mxu0 0.0
          %365 = vmatprep.subr.mxu0 0.0
          %366 = vmatpush1.msra.mxu0 0.0
          %367 = vmatprep.subr.mxu0 0.0
          %368 = vmatpush1.msra.mxu0 0.0
          %369 = vmatprep.subr.mxu0 0.0
          %370 = vmatpush1.msra.mxu0 0.0
          %371 = vmatprep.subr.mxu0 0.0
          %372 = vmatpush1.msra.mxu0 0.0
          %373 = vmatprep.subr.mxu0 0.0
          %374 = vmatpush1.msra.mxu0 0.0
          %375 = vmatprep.subr.mxu0 0.0
          %376 = vmatpush1.msra.mxu0 0.0
          %377 = vmatprep.subr.mxu0 0.0
          %378 = vmatpush1.msra.mxu0 0.0
          %379 = vmatprep.subr.mxu0 0.0
          %380 = vmatpush1.msra.mxu0 0.0
          %381 = vmatprep.subr.mxu0 0.0
          %382 = vmatpush1.msra.mxu0 0.0
          %383 = vmatprep.subr.mxu0 0.0
          %384 = vmatpush1.msra.mxu0 0.0
          %385 = vmatprep.subr.mxu0 0.0
          %386 = vmatpush1.msra.mxu0 %v325
          %387 = vmatprep.subr.mxu0 0.0
          %388 = vmatpush1.msra.mxu0 %v324
          %389 = vmatprep.subr.mxu0 0.0
          %390 = vmatpush1.msra.mxu0 %v323
          %391 = vmatprep.subr.mxu0 0.0
          %392 = vmatpush1.msra.mxu0 %v322
          %393 = vmatprep.subr.mxu0 0.0
          %394 = vmatpush2.msra.mxu0 0.0
          %395 = vmatprep.subr.mxu0 0.0
          %396 = vmatpush2.msra.mxu0 0.0
          %397 = vmatprep.subr.mxu0 0.0
          %398 = vmatpush2.msra.mxu0 0.0
          %399 = vmatprep.subr.mxu0 0.0
          %400 = vmatpush2.msra.mxu0 0.0
          %401 = vmatprep.subr.mxu0 0.0
          %402 = vmatpush2.msra.mxu0 0.0
          %403 = vmatprep.subr.mxu0 0.0
          %404 = vmatpush2.msra.mxu0 0.0
          %405 = vmatprep.subr.mxu0 0.0
          %406 = vmatpush2.msra.mxu0 0.0
          %407 = vmatprep.subr.mxu0 0.0
          %408 = vmatpush2.msra.mxu0 0.0
          %409 = vmatprep.subr.mxu0 0.0
          %410 = vmatpush2.msra.mxu0 0.0
          %411 = vmatprep.subr.mxu0 0.0
          %412 = vmatpush2.msra.mxu0 0.0
          %413 = vmatprep.subr.mxu0 0.0
          %414 = vmatpush2.msra.mxu0 0.0
          %415 = vmatprep.subr.mxu0 0.0
          %416 = vmatpush2.msra.mxu0 0.0
          %417 = vmatprep.subr.mxu0 0.0
          %418 = vmatpush2.msra.mxu0 0.0
          %419 = vmatprep.subr.mxu0 0.0
          %420 = vmatpush2.msra.mxu0 0.0
          %421 = vmatprep.subr.mxu0 0.0
          %422 = vmatpush2.msra.mxu0 0.0
          %423 = vmatprep.subr.mxu0 0.0
          %424 = vmatpush2.msra.mxu0 0.0
          %425 = vmatprep.mubr.f32.mxu0 0.0
          %426 = vmatmul.mubr.f32.gmra.mxu0 %v359
          %v427 = vpop.f32.mrf.mxu0
          %v428 = vadd.f32 %v326, %v427
          %v429 = vpop.f32.mrf.mxu0
          %430 = vdwg.mxu0
          %431 = vst [vmem:[%s237] sm:$0x1] %v428
        $region81: #{tumor_classifier_forward.1} parent=68 // pred_fallthru
          _
        %p432 = scmp.lt.s32.totalorder %s18, 1
        %s433 = scalar_select %p432, %s18, 1
        %s434 = scalar_lea.vmem %s3, %s433
        // Predicated region
        $region82: #{tumor_classifier_forward.1} parent=68 // pred_check
          %p435 = pneg %p114
        $region83: #{tumor_classifier_forward.1} parent=68 // pred_check_branch
          %437 = sbr.rel (%p435) target = $region85
        $region84: #{tumor_classifier_forward.1} parent=68 // pred_region
          _
        $region85: #{tumor_classifier_forward.1} parent=68 // pred_fallthru
          _
      $region69: #{tumor_classifier_forward.1} parent=5 // pred_fallthru
        _
      %p438 = scmp.le.s32.totalorder 2, %s9
      // Predicated region
      $region86: #{tumor_classifier_forward.1} parent=5 // pred_check
        %p439 = pneg %p438
      $region87: #{tumor_classifier_forward.1} parent=5 // pred_check_branch
        %441 = sbr.rel (%p439) target = $region89
      $region88: #{tumor_classifier_forward.1} parent=5 // pred_region
        %s442 = ssub.s32 %s9, 2
        // Predicated region
        $region90: #{tumor_classifier_forward.1} parent=88 // pred_check
          %p443 = pneg %p120
        $region91: #{tumor_classifier_forward.1} parent=88 // pred_check_branch
          %445 = sbr.rel (%p443) target = $region93
        $region92: #{tumor_classifier_forward.1} parent=88 // pred_region
          %p446 = scmp.lt.s32.totalorder %s20, 1
          %s447 = scalar_select %p446, %s20, 1
          %s448 = scalar_lea.vmem %s3, %s447
        $region93: #{tumor_classifier_forward.1} parent=88 // pred_fallthru
          _
      $region89: #{tumor_classifier_forward.1} parent=5 // pred_fallthru
        _
    $region6: #{tumor_classifier_forward.1} parent=1 // loop_footer
      %s13 = sadd.s32 1, %s9
    $region7: #{tumor_classifier_forward.1} parent=1 // loop_footer_branch
      %8 = sbr.rel target = $region3
    $region8: #{tumor_classifier_forward.1} parent=1 // loop_exit
      _

</llo_original>
